<compile_context>
chip_gen: v7x
topology: tpu7x:2x2x1
jax: 0.10.0
libtpu: 0.0.40
codegen_flags: <defaults>
</compile_context>

<pallas_src>
import jax
import jax.numpy as jnp
from jax.experimental import pallas as pl
from jax.experimental.pallas import tpu as pltpu

TILE_B_MAX = 32768  # batch tile (lane axis); ~6 MiB peak VMEM -> fits v5e/v6e/v7x budgets


def _round_up(n, m):
    return ((n + m - 1) // m) * m


def _pick_tile(batch, tile_max=TILE_B_MAX):
    """Pick a lane-aligned batch tile.

    Big enough to amortize per-grid-step overhead, small enough that batches
    >= 256 get at least 2 grid steps (so v7x can shard across its 2 TCs).
    """
    if batch <= 128:
        return 128
    if batch <= 2 * tile_max:
        return min(tile_max, _round_up((batch + 1) // 2, 128))
    return tile_max


def irisnet_kernel(alpha_ref, x_ref, w1_ref, b1_ref, w2_ref, b2_ref, o_ref):
    # Hoist the scalar SMEM read before heavier work.
    alpha = alpha_ref[0]
    # fc1 (transposed layout): [H, IN] @ [IN, TILE_B] -> [H, TILE_B].
    # x_ref is the row-major (TILE_B, IN) tile; the transpose folds into the dot.
    h = jnp.dot(w1_ref[...], x_ref[...].T,
                preferred_element_type=jnp.float32) + b1_ref[...]
    # PReLU (single learned slope, torch default num_parameters=1)
    h = jnp.maximum(h, 0.0) + alpha * jnp.minimum(h, 0.0)
    # fc2: [OUT, H] @ [H, TILE_B] -> [OUT, TILE_B]
    out = jnp.dot(w2_ref[...], h,
                  preferred_element_type=jnp.float32) + b2_ref[...]
    o_ref[...] = out.astype(o_ref.dtype)


def irisnet_forward(x, params, *, tile_b=None):
    """x: [batch, in_features] (torch layout).  Returns [batch, out_features]."""
    w1, b1, alpha, w2, b2 = (params["w1"], params["b1"], params["alpha"],
                             params["w2"], params["b2"])
    hidden, in_size = w1.shape
    out_size = w2.shape[0]
    batch = x.shape[0]

    if tile_b is None:
        tile_b = _pick_tile(batch)
    grid = (pl.cdiv(batch, tile_b),)

    param_bytes = 4 * (w1.size + b1.size + w2.size + b2.size + alpha.size)
    cost = pl.CostEstimate(
        flops=2 * batch * (in_size * hidden + hidden * out_size) + 3 * batch * hidden,
        transcendentals=0,
        bytes_accessed=4 * batch * (in_size + out_size) + param_bytes,
    )

    out_t = pl.pallas_call(
        irisnet_kernel,
        out_shape=jax.ShapeDtypeStruct((out_size, batch), jnp.float32),
        grid=grid,
        in_specs=[
            # alpha scalar lives in SMEM, passed whole.
            pl.BlockSpec(memory_space=pltpu.MemorySpace.SMEM),
            # x tile: row-major, contiguous in HBM; grid walks the batch axis.
            pl.BlockSpec((tile_b, in_size), lambda i: (i, 0)),
            # Weights / biases: constant block index -> VMEM-resident across steps.
            pl.BlockSpec((hidden, in_size), lambda i: (0, 0)),
            pl.BlockSpec((hidden, 1), lambda i: (0, 0)),
            pl.BlockSpec((out_size, hidden), lambda i: (0, 0)),
            pl.BlockSpec((out_size, 1), lambda i: (0, 0)),
        ],
        # Lane-dense output block (unmasked full-lane stores); ragged last block
        # is handled by Pallas (OOB writes dropped).
        out_specs=pl.BlockSpec((out_size, tile_b), lambda i: (0, i)),
        compiler_params=pltpu.CompilerParams(
            dimension_semantics=("parallel",),
            vmem_limit_bytes=32 * 1024 * 1024,
        ),
        cost_estimate=cost,
    )(alpha, x, w1, b1, w2, b2)

    # Module API is (batch, out_features); small output pass back to row-major.
    return out_t.T


def init_params(key, input_size=4, hidden_size=10, output_size=3):
    # Mimic torch.nn.Linear default init: U(-1/sqrt(fan_in), 1/sqrt(fan_in)).
    # Weights stored in torch layout [out_features, in_features]; biases as
    # column vectors so they broadcast along lanes in the transposed kernel.
    k1, k2, k3, k4 = jax.random.split(key, 4)
    bound1 = 1.0 / jnp.sqrt(jnp.float32(input_size))
    bound2 = 1.0 / jnp.sqrt(jnp.float32(hidden_size))
    w1 = jax.random.uniform(k1, (hidden_size, input_size), jnp.float32,
                            minval=-bound1, maxval=bound1)
    b1 = jax.random.uniform(k2, (hidden_size, 1), jnp.float32,
                            minval=-bound1, maxval=bound1)
    w2 = jax.random.uniform(k3, (output_size, hidden_size), jnp.float32,
                            minval=-bound2, maxval=bound2)
    b2 = jax.random.uniform(k4, (output_size, 1), jnp.float32,
                            minval=-bound2, maxval=bound2)
    alpha = jnp.full((1,), 0.25, jnp.float32)  # torch PReLU default init
    return {"w1": w1, "b1": b1, "alpha": alpha, "w2": w2, "b2": b2}


def reference_forward(x, params):
    # Pure-JAX reference in the standard (row-major) layout.
    h = x @ params["w1"].T + params["b1"].T
    a = params["alpha"][0]
    h = jnp.where(h > 0, h, a * h)
    return h @ params["w2"].T + params["b2"].T


if __name__ == "__main__":
    key = jax.random.PRNGKey(0)
    pkey, xkey1, xkey2 = jax.random.split(key, 3)
    params = init_params(pkey, input_size=4, hidden_size=10, output_size=3)

    # Module-native small batch (single ragged grid step).
    x_small = jax.random.normal(xkey1, (8, 4), jnp.float32)
    out_small = jax.block_until_ready(irisnet_forward(x_small, params))
    ref_small = reference_forward(x_small, params)
    assert out_small.shape == (8, 3)
    assert jnp.allclose(out_small, ref_small, atol=1e-5, rtol=1e-5)

    # Non-multiple-of-tile batch: exercises multi-step grid + ragged last block.
    x_big = jax.random.normal(xkey2, (300, 4), jnp.float32)
    out_big = jax.block_until_ready(irisnet_forward(x_big, params))
    ref_big = reference_forward(x_big, params)
    assert out_big.shape == (300, 3)
    assert jnp.allclose(out_big, ref_big, atol=1e-5, rtol=1e-5)

    print("KERNEL_OK")
</pallas_src>

<mosaic_0001>
module attributes {stable_mosaic.version = 11 : i64} {
  func.func @irisnet_kernel(%arg0: i32, %arg1: memref<1xf32, #tpu.memory_space<smem>>, %arg2: memref<128x4xf32, #tpu.memory_space<vmem>>, %arg3: memref<10x4xf32, #tpu.memory_space<vmem>>, %arg4: memref<10x1xf32, #tpu.memory_space<vmem>>, %arg5: memref<3x10xf32, #tpu.memory_space<vmem>>, %arg6: memref<3x1xf32, #tpu.memory_space<vmem>>, %arg7: memref<3x128xf32, #tpu.memory_space<vmem>>) attributes {dimension_semantics = [#tpu.dimension_semantics<parallel>], iteration_bounds = array<i64: 1>, scalar_prefetch = 0 : i64, scratch_operands = 0 : i64, tpu.core_type = #tpu.core_type<tc>, window_params = [{transform_indices = @transform_0, window_bounds = array<i64: 1>}, {transform_indices = @transform_1, window_bounds = array<i64: 128, 4>}, {pipeline_mode = #tpu.pipeline_mode<synchronous>, transform_indices = @transform_2, window_bounds = array<i64: 10, 4>}, {pipeline_mode = #tpu.pipeline_mode<synchronous>, transform_indices = @transform_3, window_bounds = array<i64: 10, 1>}, {pipeline_mode = #tpu.pipeline_mode<synchronous>, transform_indices = @transform_4, window_bounds = array<i64: 3, 10>}, {pipeline_mode = #tpu.pipeline_mode<synchronous>, transform_indices = @transform_5, window_bounds = array<i64: 3, 1>}, {transform_indices = @transform_6, window_bounds = array<i64: 3, 128>}]} {
    %c0 = arith.constant 0 : index
    %0 = memref.load %arg1[%c0] : memref<1xf32, #tpu.memory_space<smem>>
    %c0_0 = arith.constant 0 : index
    %c0_1 = arith.constant 0 : index
    %1 = vector.load %arg3[%c0_0, %c0_1] : memref<10x4xf32, #tpu.memory_space<vmem>>, vector<10x4xf32>
    %c0_2 = arith.constant 0 : index
    %c0_3 = arith.constant 0 : index
    %2 = vector.load %arg2[%c0_2, %c0_3] : memref<128x4xf32, #tpu.memory_space<vmem>>, vector<128x4xf32>
    %3 = tpu.transpose %2, [1, 0] : vector<128x4xf32> -> vector<4x128xf32>
    %cst = arith.constant dense<0.000000e+00> : vector<10x128xf32>
    %4 = tpu.matmul %1, %3, %cst {dimension_numbers = #tpu.dot_dimension_numbers<[1], [0], [0], [1], [0, 0, 1, 1], [], []>} : vector<10x4xf32>, vector<4x128xf32>, vector<10x128xf32> -> vector<10x128xf32>
    %c0_4 = arith.constant 0 : index
    %c0_5 = arith.constant 0 : index
    %5 = vector.load %arg4[%c0_4, %c0_5] : memref<10x1xf32, #tpu.memory_space<vmem>>, vector<10x1xf32>
    %6 = vector.broadcast %5 : vector<10x1xf32> to vector<10x128xf32>
    %7 = arith.addf %4, %6 : vector<10x128xf32>
    %cst_6 = arith.constant 0.000000e+00 : f32
    %8 = vector.broadcast %cst_6 : f32 to vector<10x128xf32>
    %9 = arith.maximumf %7, %8 : vector<10x128xf32>
    %cst_7 = arith.constant 0.000000e+00 : f32
    %10 = vector.broadcast %cst_7 : f32 to vector<10x128xf32>
    %11 = arith.minimumf %7, %10 : vector<10x128xf32>
    %12 = vector.broadcast %0 : f32 to vector<10x128xf32>
    %13 = arith.mulf %12, %11 : vector<10x128xf32>
    %14 = arith.addf %9, %13 : vector<10x128xf32>
    %c0_8 = arith.constant 0 : index
    %c0_9 = arith.constant 0 : index
    %15 = vector.load %arg5[%c0_8, %c0_9] : memref<3x10xf32, #tpu.memory_space<vmem>>, vector<3x10xf32>
    %cst_10 = arith.constant dense<0.000000e+00> : vector<3x128xf32>
    %16 = tpu.matmul %15, %14, %cst_10 {dimension_numbers = #tpu.dot_dimension_numbers<[1], [0], [0], [1], [0, 0, 1, 1], [], []>} : vector<3x10xf32>, vector<10x128xf32>, vector<3x128xf32> -> vector<3x128xf32>
    %c0_11 = arith.constant 0 : index
    %c0_12 = arith.constant 0 : index
    %17 = vector.load %arg6[%c0_11, %c0_12] : memref<3x1xf32, #tpu.memory_space<vmem>>, vector<3x1xf32>
    %18 = vector.broadcast %17 : vector<3x1xf32> to vector<3x128xf32>
    %19 = arith.addf %16, %18 : vector<3x128xf32>
    %c0_13 = arith.constant 0 : index
    %c0_14 = arith.constant 0 : index
    %20 = vector.load %arg7[%c0_13, %c0_14] : memref<3x128xf32, #tpu.memory_space<vmem>>, vector<3x128xf32>
    tpu.vector_store %arg7[%c0_13, %c0_14], %19 {strides = array<i32>} : memref<3x128xf32, #tpu.memory_space<vmem>>, vector<3x128xf32>,
    return
  }
  func.func @transform_0(%arg0: i32) -> i32 {
    %c0_i32 = arith.constant 0 : i32
    %c0_i32_0 = arith.constant 0 : i32
    return %c0_i32 : i32
  }
  func.func @transform_1(%arg0: i32) -> (i32, i32) {
    %c0_i32 = arith.constant 0 : i32
    %c0_i32_0 = arith.constant 0 : i32
    return %arg0, %c0_i32 : i32, i32
  }
  func.func @transform_2(%arg0: i32) -> (i32, i32) {
    %c0_i32 = arith.constant 0 : i32
    %c0_i32_0 = arith.constant 0 : i32
    %c0_i32_1 = arith.constant 0 : i32
    return %c0_i32, %c0_i32_0 : i32, i32
  }
  func.func @transform_3(%arg0: i32) -> (i32, i32) {
    %c0_i32 = arith.constant 0 : i32
    %c0_i32_0 = arith.constant 0 : i32
    %c0_i32_1 = arith.constant 0 : i32
    return %c0_i32, %c0_i32_0 : i32, i32
  }
  func.func @transform_4(%arg0: i32) -> (i32, i32) {
    %c0_i32 = arith.constant 0 : i32
    %c0_i32_0 = arith.constant 0 : i32
    %c0_i32_1 = arith.constant 0 : i32
    return %c0_i32, %c0_i32_0 : i32, i32
  }
  func.func @transform_5(%arg0: i32) -> (i32, i32) {
    %c0_i32 = arith.constant 0 : i32
    %c0_i32_0 = arith.constant 0 : i32
    %c0_i32_1 = arith.constant 0 : i32
    return %c0_i32, %c0_i32_0 : i32, i32
  }
  func.func @transform_6(%arg0: i32) -> (i32, i32) {
    %c0_i32 = arith.constant 0 : i32
    %c0_i32_0 = arith.constant 0 : i32
    return %c0_i32, %arg0 : i32, i32
  }
}

</mosaic_0001>

<llo_original>
// kernel: tpu_custom_call.1
$region0: #{tpu_custom_call.1}
  #allocation0 [shape = 'u32[]', space=smem, size = 0x4, offset = 0x4, fixed_abs, tag = 'smem constant byte address 0x4 - core index']
  #allocation1 [shape = 'u32[144,128]{1,0:T(1,128)}', space=vmem, size = 0x12000, scoped, tag = 'internal scratch']
  #allocation2 [shape = 'f32[1]{0:T(128)S(6)}', space=smem, size = 0x200, scoped, tag = 'scoped memory for tpu_custom_call.1']
  %s0 = inlined_call_operand.<no memory space> [shape: f32[1], index: 0, kind: input, shape index: {}]
  %s1 = inlined_call_operand.vmem [shape: f32[8,4], index: 1, kind: input, shape index: {}]
  %s2 = inlined_call_operand.vmem [shape: f32[10,4], index: 2, kind: input, shape index: {}]
  %s3 = inlined_call_operand.vmem [shape: f32[10,1], index: 3, kind: input, shape index: {}]
  %s4 = inlined_call_operand.vmem [shape: f32[3,10], index: 4, kind: input, shape index: {}]
  %s5 = inlined_call_operand.vmem [shape: f32[3,1], index: 5, kind: input, shape index: {}]
  %s6 = inlined_call_operand.hbm [shape: f32[3,8], index: 6, kind: output, shape index: {}]
  %s7 = sld [smem:[#allocation0]]
  $region34: #{tpu_custom_call.1} parent=0
    _
  %s9 = ssub.s32 1, %s7
  %s10 = scalar_select 0, %s9, %s7
  %11 = sst [smem:[#allocation2]] %s0
  $region1: #{tpu_custom_call.1} parent=0
    #allocation3 [shape = 'u8[2048]{0}', space=vmem, size = 0x800, scoped, tag = 'output window, operand 0, single buffered']
    #allocation4 [shape = 's32[1]{0}', space=sflag, size = 0x4, scoped, tag = 'scoped memory for tpu_custom_call.1']
    %12 = vsyncpa [#allocation4], 0
    // Predicated region
    $region2: #{tpu_custom_call.1} parent=1 // pred_check
      _
    $region3: #{tpu_custom_call.1} parent=1 // pred_check_branch
      %14 = sbr.rel (0) target = $region5
    $region4: #{tpu_custom_call.1} parent=1 // pred_region
      _
    $region5: #{tpu_custom_call.1} parent=1 // pred_fallthru
      _
    // Predicated region
    $region6: #{tpu_custom_call.1} parent=1 // pred_check
      _
    $region7: #{tpu_custom_call.1} parent=1 // pred_check_branch
      %16 = sbr.rel (0) target = $region9
    $region8: #{tpu_custom_call.1} parent=1 // pred_region
      _
    $region9: #{tpu_custom_call.1} parent=1 // pred_fallthru
      _
    // Predicated region
    $region10: #{tpu_custom_call.1} parent=1 // pred_check
      _
    $region11: #{tpu_custom_call.1} parent=1 // pred_check_branch
      %18 = sbr.rel (0) target = $region13
    $region12: #{tpu_custom_call.1} parent=1 // pred_region
      _
    $region13: #{tpu_custom_call.1} parent=1 // pred_fallthru
      _
    // Predicated region
    $region14: #{tpu_custom_call.1} parent=1 // pred_check
      _
    $region15: #{tpu_custom_call.1} parent=1 // pred_check_branch
      %20 = sbr.rel (0) target = $region17
    $region16: #{tpu_custom_call.1} parent=1 // pred_region
      _
    $region17: #{tpu_custom_call.1} parent=1 // pred_fallthru
      _
    // Predicated region
    $region18: #{tpu_custom_call.1} parent=1 // pred_check
      _
    $region19: #{tpu_custom_call.1} parent=1 // pred_check_branch
      %22 = sbr.rel (0) target = $region21
    $region20: #{tpu_custom_call.1} parent=1 // pred_region
      _
    $region21: #{tpu_custom_call.1} parent=1 // pred_fallthru
      _
    // Predicated region
    $region22: #{tpu_custom_call.1} parent=1 // pred_check
      _
    $region23: #{tpu_custom_call.1} parent=1 // pred_check_branch
      %24 = sbr.rel (0) target = $region25
    $region24: #{tpu_custom_call.1} parent=1 // pred_region
      _
    $region25: #{tpu_custom_call.1} parent=1 // pred_fallthru
      _
    %s25 = sld [smem:[#allocation2]]
    %v26 = vld [vmem:[%s2] sm:$0xff]
    %v27 = vld [vmem:[%s2 + $0x8] sm:$0x3]
    %v28 = vld [vmem:[%s1] sm:$0xff]
    %v29 = vld [vmem:[%s1 + $0x8] sm:$0xff]
    %v30 = vld [vmem:[%s1 + $0x10] sm:$0xff]
    %v31 = vld [vmem:[%s1 + $0x18] sm:$0xff]
    %v32 = vld [vmem:[%s1 + $0x20] sm:$0xff]
    %v33 = vld [vmem:[%s1 + $0x28] sm:$0xff]
    %v34 = vld [vmem:[%s1 + $0x30] sm:$0xff]
    %v35 = vld [vmem:[%s1 + $0x38] sm:$0xff]
    %v36 = vld [vmem:[%s1 + $0x40] sm:$0xff]
    %v37 = vld [vmem:[%s1 + $0x48] sm:$0xff]
    %v38 = vld [vmem:[%s1 + $0x50] sm:$0xff]
    %v39 = vld [vmem:[%s1 + $0x58] sm:$0xff]
    %v40 = vld [vmem:[%s1 + $0x60] sm:$0xff]
    %v41 = vld [vmem:[%s1 + $0x68] sm:$0xff]
    %v42 = vld [vmem:[%s1 + $0x70] sm:$0xff]
    %v43 = vld [vmem:[%s1 + $0x78] sm:$0xff]
    %v44 = vld [vmem:[%s3] sm:$0xff]
    %v45 = vld [vmem:[%s3 + $0x8] sm:$0x3]
    %47 = vset.pattern.permute.xlu0 0
    %48 = vperm.xlu0 %47, %v44
    %v49 = vpop.permute.xlu0 %48
    %52 = vset.pattern.permute.xlu0 0
    %53 = vperm.xlu0 %52, %v45
    %v54 = vpop.permute.xlu0 %53
    %vm56 = vcmask 31744
    %v58 = vsel %vm56, %v26, 0
    %v61 = vsel %vm56, %v27, 0
    %v64 = vsel %vm56, %v28, 0
    %v67 = vsel %vm56, %v29, 0
    %v70 = vsel %vm56, %v30, 0
    %v73 = vsel %vm56, %v31, 0
    %v76 = vsel %vm56, %v32, 0
    %v79 = vsel %vm56, %v33, 0
    %v82 = vsel %vm56, %v34, 0
    %v85 = vsel %vm56, %v35, 0
    %v88 = vsel %vm56, %v36, 0
    %v91 = vsel %vm56, %v37, 0
    %v94 = vsel %vm56, %v38, 0
    %v97 = vsel %vm56, %v39, 0
    %v100 = vsel %vm56, %v40, 0
    %v103 = vsel %vm56, %v41, 0
    %v106 = vsel %vm56, %v42, 0
    %v109 = vsel %vm56, %v43, 0
    %111 = vmatprep.subr.mxu0 0.0
    %112 = vmatpush1.xpose.msra.mxu0 %v64
    %113 = vmatprep.subr.mxu0 0.0
    %114 = vmatpush1.xpose.msra.mxu0 %v67
    %115 = vmatprep.subr.mxu0 0.0
    %116 = vmatpush1.xpose.msra.mxu0 %v70
    %117 = vmatprep.subr.mxu0 0.0
    %118 = vmatpush1.xpose.msra.mxu0 %v73
    %119 = vmatprep.subr.mxu0 0.0
    %120 = vmatpush1.xpose.msra.mxu0 %v76
    %121 = vmatprep.subr.mxu0 0.0
    %122 = vmatpush1.xpose.msra.mxu0 %v79
    %123 = vmatprep.subr.mxu0 0.0
    %124 = vmatpush1.xpose.msra.mxu0 %v82
    %125 = vmatprep.subr.mxu0 0.0
    %126 = vmatpush1.xpose.msra.mxu0 %v85
    %127 = vmatprep.subr.mxu0 0.0
    %128 = vmatpush1.xpose.msra.mxu0 %v88
    %129 = vmatprep.subr.mxu0 0.0
    %130 = vmatpush1.xpose.msra.mxu0 %v91
    %131 = vmatprep.subr.mxu0 0.0
    %132 = vmatpush1.xpose.msra.mxu0 %v94
    %133 = vmatprep.subr.mxu0 0.0
    %134 = vmatpush1.xpose.msra.mxu0 %v97
    %135 = vmatprep.subr.mxu0 0.0
    %136 = vmatpush1.xpose.msra.mxu0 %v100
    %137 = vmatprep.subr.mxu0 0.0
    %138 = vmatpush1.xpose.msra.mxu0 %v103
    %139 = vmatprep.subr.mxu0 0.0
    %140 = vmatpush1.xpose.msra.mxu0 %v106
    %141 = vmatprep.subr.mxu0 0.0
    %142 = vmatpush1.xpose.msra.mxu0 %v109
    %143 = vmatprep.subr.mxu0 0.0
    %144 = vmatpush1.xpose.msra.mxu0 0.0
    %145 = vmatprep.subr.mxu0 0.0
    %146 = vmatpush1.xpose.msra.mxu0 0.0
    %147 = vmatprep.subr.mxu0 0.0
    %148 = vmatpush1.xpose.msra.mxu0 0.0
    %149 = vmatprep.subr.mxu0 0.0
    %150 = vmatpush1.xpose.msra.mxu0 0.0
    %151 = vmatprep.subr.mxu0 0.0
    %152 = vmatpush1.xpose.msra.mxu0 0.0
    %153 = vmatprep.subr.mxu0 0.0
    %154 = vmatpush1.xpose.msra.mxu0 0.0
    %155 = vmatprep.subr.mxu0 0.0
    %156 = vmatpush1.xpose.msra.mxu0 0.0
    %157 = vmatprep.subr.mxu0 0.0
    %158 = vmatpush1.xpose.msra.mxu0 0.0
    %159 = vmatprep.subr.mxu0 0.0
    %160 = vmatpush1.xpose.msra.mxu0 0.0
    %161 = vmatprep.subr.mxu0 0.0
    %162 = vmatpush1.xpose.msra.mxu0 0.0
    %163 = vmatprep.subr.mxu0 0.0
    %164 = vmatpush1.xpose.msra.mxu0 0.0
    %165 = vmatprep.subr.mxu0 0.0
    %166 = vmatpush1.xpose.msra.mxu0 0.0
    %167 = vmatprep.subr.mxu0 0.0
    %168 = vmatpush1.xpose.msra.mxu0 0.0
    %169 = vmatprep.subr.mxu0 0.0
    %170 = vmatpush1.xpose.msra.mxu0 0.0
    %171 = vmatprep.subr.mxu0 0.0
    %172 = vmatpush1.xpose.msra.mxu0 0.0
    %173 = vmatprep.subr.mxu0 0.0
    %174 = vmatpush1.xpose.msra.mxu0 0.0
    %175 = vmatprep.mubr.f32.mxu0 0.0
    %176 = vmatmul.mubr.f32.gmra.mrb[0].mxu0 %v58
    %v177 = vpop.f32.mrb[0].mxu0
    %v178 = vadd.f32 %v49, %v177
    %v179 = vpop.f32.mrb[0].mxu0
    %180 = vmatprep.mubr.f32.mxu0 0.0
    %181 = vmatmul.mubr.f32.gmra.mrb[0].mxu0 %v61
    %v182 = vpop.f32.mrb[0].mxu0
    %v183 = vadd.f32 %v54, %v182
    %v184 = vpop.f32.mrb[0].mxu0
    %185 = vdwg.mxu0
    %v186 = vmax.f32 %v178, 0.0
    %v187 = vmax.f32 %v183, 0.0
    %v188 = vmin.f32 %v178, 0.0
    %v189 = vmin.f32 %v183, 0.0
    %v190 = vstv %s25
    %v191 = vmul.f32 %v190, %v188
    %v192 = vmul.f32 %v190, %v189
    %v193 = vadd.f32 %v186, %v191
    %v194 = vadd.f32 %v187, %v192
    %v195 = vld [vmem:[%s4] sm:$0x7]
    %v196 = vld [vmem:[%s5] sm:$0x7]
    %198 = vset.pattern.permute.xlu0 0
    %199 = vperm.xlu0 %198, %v196
    %v200 = vpop.permute.xlu0 %199
    %vm202 = vcmask 80896
    %v204 = vsel %vm202, %v195, 0
    %vm206 = vcmask 1041408
    %v208 = vsel %vm206, %v194, 0
    %210 = vmatprep.subr.mxu0 0.0
    %211 = vmatpush1.msra.mxu0 %v193
    %212 = vmatprep.subr.mxu0 0.0
    %213 = vmatpush1.msra.mxu0 %v208
    %214 = vmatprep.subr.mxu0 0.0
    %215 = vmatpush1.msra.mxu0 0.0
    %216 = vmatprep.subr.mxu0 0.0
    %217 = vmatpush1.msra.mxu0 0.0
    %218 = vmatprep.subr.mxu0 0.0
    %219 = vmatpush1.msra.mxu0 0.0
    %220 = vmatprep.subr.mxu0 0.0
    %221 = vmatpush1.msra.mxu0 0.0
    %222 = vmatprep.subr.mxu0 0.0
    %223 = vmatpush1.msra.mxu0 0.0
    %224 = vmatprep.subr.mxu0 0.0
    %225 = vmatpush1.msra.mxu0 0.0
    %226 = vmatprep.subr.mxu0 0.0
    %227 = vmatpush1.msra.mxu0 0.0
    %228 = vmatprep.subr.mxu0 0.0
    %229 = vmatpush1.msra.mxu0 0.0
    %230 = vmatprep.subr.mxu0 0.0
    %231 = vmatpush1.msra.mxu0 0.0
    %232 = vmatprep.subr.mxu0 0.0
    %233 = vmatpush1.msra.mxu0 0.0
    %234 = vmatprep.subr.mxu0 0.0
    %235 = vmatpush1.msra.mxu0 0.0
    %236 = vmatprep.subr.mxu0 0.0
    %237 = vmatpush1.msra.mxu0 0.0
    %238 = vmatprep.subr.mxu0 0.0
    %239 = vmatpush1.msra.mxu0 0.0
    %240 = vmatprep.subr.mxu0 0.0
    %241 = vmatpush1.msra.mxu0 0.0
    %242 = vmatprep.subr.mxu0 0.0
    %243 = vmatpush1.msra.mxu0 0.0
    %244 = vmatprep.subr.mxu0 0.0
    %245 = vmatpush1.msra.mxu0 0.0
    %246 = vmatprep.subr.mxu0 0.0
    %247 = vmatpush1.msra.mxu0 0.0
    %248 = vmatprep.subr.mxu0 0.0
    %249 = vmatpush1.msra.mxu0 0.0
    %250 = vmatprep.subr.mxu0 0.0
    %251 = vmatpush1.msra.mxu0 0.0
    %252 = vmatprep.subr.mxu0 0.0
    %253 = vmatpush1.msra.mxu0 0.0
    %254 = vmatprep.subr.mxu0 0.0
    %255 = vmatpush1.msra.mxu0 0.0
    %256 = vmatprep.subr.mxu0 0.0
    %257 = vmatpush1.msra.mxu0 0.0
    %258 = vmatprep.subr.mxu0 0.0
    %259 = vmatpush1.msra.mxu0 0.0
    %260 = vmatprep.subr.mxu0 0.0
    %261 = vmatpush1.msra.mxu0 0.0
    %262 = vmatprep.subr.mxu0 0.0
    %263 = vmatpush1.msra.mxu0 0.0
    %264 = vmatprep.subr.mxu0 0.0
    %265 = vmatpush1.msra.mxu0 0.0
    %266 = vmatprep.subr.mxu0 0.0
    %267 = vmatpush1.msra.mxu0 0.0
    %268 = vmatprep.subr.mxu0 0.0
    %269 = vmatpush1.msra.mxu0 0.0
    %270 = vmatprep.subr.mxu0 0.0
    %271 = vmatpush1.msra.mxu0 0.0
    %272 = vmatprep.subr.mxu0 0.0
    %273 = vmatpush1.msra.mxu0 0.0
    %274 = vmatprep.mubr.f32.mxu0 0.0
    %275 = vmatmul.mubr.f32.gmra.mrb[0].mxu0 %v204
    %v276 = vpop.f32.mrb[0].mxu0
    %v277 = vadd.f32 %v200, %v276
    %v278 = vpop.f32.mrb[0].mxu0
    %279 = vdwg.mxu0
    %280 = vst [vmem:[#allocation3] sm:$0x7] %v277
    // Predicated region
    $region26: #{tpu_custom_call.1} parent=1 // pred_check
      _
    $region27: #{tpu_custom_call.1} parent=1 // pred_check_branch
      %282 = sbr.rel (0) target = $region29
    $region28: #{tpu_custom_call.1} parent=1 // pred_region
      %s284 = ssub.s32 64, 64
      %285 = vsyncadd [#allocation4], %s284
      %s287 = sshll.u32 [#allocation3], 4
      %s288 = int_to_ptr.vmem [resolvable:$true] %s287
      %290 = dma.vmem_to_hbm [thread:$0]  %s288, 64, %s6, [#allocation4]
    $region29: #{tpu_custom_call.1} parent=1 // pred_fallthru
      _
    // Predicated region
    $region30: #{tpu_custom_call.1} parent=1 // pred_check
      _
    $region31: #{tpu_custom_call.1} parent=1 // pred_check_branch
      %292 = sbr.rel (0) target = $region33
    $region32: #{tpu_custom_call.1} parent=1 // pred_region
      %293 = dma.done [#allocation4], 64
    $region33: #{tpu_custom_call.1} parent=1 // pred_fallthru
      _
    %294 = vsyncpa [#allocation4], 1

</llo_original>
